<compile_context>
chip_gen: v7x
topology: tpu7x:2x2x1
jax: 0.10.0
libtpu: 0.0.40
codegen_flags: <defaults>
</compile_context>

<pallas_src>
import functools
import math

import jax
import jax.numpy as jnp
from jax.experimental import pallas as pl
from jax.experimental.pallas import tpu as pltpu


def _round_up(n, m):
    return ((n + m - 1) // m) * m


def _mlp_kernel(*refs, num_hidden_layers):
    # refs = (x, w0, b0, w1, b1, ..., w_out, b_out, o)
    x_ref = refs[0]
    o_ref = refs[-1]
    params = refs[1:-1]

    h = x_ref[...]
    # Hidden layers (unrolled at trace time): Linear -> ReLU -> Dropout(identity at eval)
    for i in range(num_hidden_layers):
        w = params[2 * i][...]          # (in, out) (block-diagonal if packed)
        b = params[2 * i + 1][...]      # (1, out)
        h = jnp.maximum(jnp.dot(h, w, preferred_element_type=jnp.float32) + b, 0.0)
        # TODO(synk): Dropout(0.2) is only active in training; eval forward is identity.

    # Output layer: (rows, p*reduced) @ (p*reduced, p) + (1, p).  For p == 1 this is
    # the plain (reduced, 1) output layer.
    w_out = params[-2][...]
    b_out = params[-1][...]
    o_ref[...] = (jnp.dot(h, w_out, preferred_element_type=jnp.float32) + b_out
                  ).astype(o_ref.dtype)


def _block_diag(w, p):
    """p-way block-diagonal replication of a (in, out) weight -> (p*in, p*out)."""
    if p == 1:
        return w
    return jnp.kron(jnp.eye(p, dtype=w.dtype), w)


def phq_forward(x, hidden_params, out_w, out_b, *, tb=8192):
    """x: (batch, input_size) f32.  hidden_params: list of (W(in,out), b(out,)).
    out_w: (reduced, 1), out_b: (1,).  Returns (batch, 1) f32."""
    batch, input_size = x.shape
    num_hidden = len(hidden_params)

    # --- Row packing factor: p batch rows per 128-lane row via block-diag weights.
    widths = [input_size] + [w.shape[1] for w, _ in hidden_params]
    max_width = max(widths)
    p = max(1, 128 // max_width)
    if batch % p != 0:
        p = 1  # fallback: unpacked path (partial tail rows would need a host-side pad)

    # Free, layout-preserving view for row-major x: (batch, in) -> (batch/p, p*in).
    x_in = x if p == 1 else x.reshape(batch // p, input_size * p)
    rows = batch // p
    feat = x_in.shape[1]

    # --- Parameters (packed once per call; in a real pipeline pack once and reuse).
    flat = []
    flat_specs = []
    for w, b in hidden_params:
        w_p = _block_diag(w, p)                       # (p*in, p*out)
        b_p = jnp.tile(b, p).reshape(1, -1)           # (1, p*out)
        flat += [w_p, b_p]
        # Full-array blocks with constant index_map -> stay resident in VMEM across
        # batch-tile grid steps (no per-step weight DMA).
        flat_specs += [
            pl.BlockSpec(w_p.shape, lambda i: (0, 0)),
            pl.BlockSpec(b_p.shape, lambda i: (0, 0)),
        ]
    w_out_p = _block_diag(out_w, p)                   # (p*reduced, p)
    b_out_p = jnp.tile(out_b, p).reshape(1, -1)       # (1, p)
    flat += [w_out_p, b_out_p]
    flat_specs += [
        pl.BlockSpec(w_out_p.shape, lambda i: (0, 0)),
        pl.BlockSpec(b_out_p.shape, lambda i: (0, 0)),
    ]

    # --- Batch tiling (in packed rows).  tb is expressed in original batch rows.
    tb_rows = max(8, ((tb // p) // 8) * 8)
    tb_rows = min(tb_rows, _round_up(rows, 8))        # don't over-allocate for tiny batches
    grid = (pl.cdiv(rows, tb_rows),)                  # partial last block handled by Pallas

    kernel = functools.partial(_mlp_kernel, num_hidden_layers=num_hidden)

    out = pl.pallas_call(
        kernel,
        out_shape=jax.ShapeDtypeStruct((rows, p), jnp.float32),
        grid=grid,
        in_specs=[pl.BlockSpec((tb_rows, feat), lambda i: (i, 0))] + flat_specs,
        out_specs=pl.BlockSpec((tb_rows, p), lambda i: (i, 0)),
        compiler_params=pltpu.CompilerParams(
            dimension_semantics=("parallel",),        # megacore sharding over batch tiles
            vmem_limit_bytes=64 * 1024 * 1024,        # raise v5e's 16 MiB scoped default
        ),
    )(x_in, *flat)

    # Row-major unpack: out[r, g] is batch row r*p + g.  PyTorch: x.view(-1, 1).
    return out.reshape(-1, 1)


def _init_linear(key, in_f, out_f):
    # PyTorch nn.Linear default init: U(-1/sqrt(in), 1/sqrt(in)) for W and b.
    kw, kb = jax.random.split(key)
    bound = 1.0 / math.sqrt(in_f)
    w = jax.random.uniform(kw, (in_f, out_f), jnp.float32, -bound, bound)
    b = jax.random.uniform(kb, (out_f,), jnp.float32, -bound, bound)
    return w, b


def make_phq_params(key, input_size, hidden_num, hidden_size):
    hidden_params = []
    if hidden_num > 0:
        dims = [input_size] + [hidden_size] * hidden_num
        for i in range(hidden_num):
            key, sub = jax.random.split(key)
            hidden_params.append(_init_linear(sub, dims[i], dims[i + 1]))
        reduced = hidden_size // 2
        key, sub = jax.random.split(key)
        hidden_params.append(_init_linear(sub, hidden_size, reduced))
        key, sub = jax.random.split(key)
        out_w, out_b = _init_linear(sub, reduced, 1)
    else:
        key, sub = jax.random.split(key)
        out_w, out_b = _init_linear(sub, input_size, 1)
    return hidden_params, out_w, out_b


def phq_forward_ref(x, hidden_params, out_w, out_b):
    h = x
    for w, b in hidden_params:
        h = jnp.maximum(h @ w + b, 0.0)
    return (h @ out_w + out_b).reshape(-1, 1)


if __name__ == "__main__":
    input_size, hidden_num, hidden_size = 32, 2, 32

    key = jax.random.PRNGKey(0)
    kx, kp, kx2, kx3 = jax.random.split(key, 4)
    hidden_params, out_w, out_b = make_phq_params(kp, input_size, hidden_num, hidden_size)

    # Small batch: single tile, packed (p=4) path.
    x_small = jax.random.normal(kx, (8, input_size), jnp.float32)
    y_small = jax.block_until_ready(phq_forward(x_small, hidden_params, out_w, out_b))
    y_small_ref = phq_forward_ref(x_small, hidden_params, out_w, out_b)
    assert y_small.shape == (8, 1)
    assert jnp.allclose(y_small, y_small_ref, atol=3e-5, rtol=1e-4)

    # Larger batch, not a tile multiple: multi-step grid + partial last block, no pad.
    x_mid = jax.random.normal(kx2, (1000, input_size), jnp.float32)
    y_mid = jax.block_until_ready(phq_forward(x_mid, hidden_params, out_w, out_b, tb=512))
    y_mid_ref = phq_forward_ref(x_mid, hidden_params, out_w, out_b)
    assert y_mid.shape == (1000, 1)
    assert jnp.allclose(y_mid, y_mid_ref, atol=3e-5, rtol=1e-4)

    # Batch not divisible by the packing factor: unpacked (p=1) fallback, partial block.
    x_odd = jax.random.normal(kx3, (10, input_size), jnp.float32)
    y_odd = jax.block_until_ready(phq_forward(x_odd, hidden_params, out_w, out_b))
    y_odd_ref = phq_forward_ref(x_odd, hidden_params, out_w, out_b)
    assert y_odd.shape == (10, 1)
    assert jnp.allclose(y_odd, y_odd_ref, atol=3e-5, rtol=1e-4)

    # hidden_num == 0 path (output layer only).
    hp0, ow0, ob0 = make_phq_params(kp, input_size, 0, hidden_size)
    y0 = jax.block_until_ready(phq_forward(x_small, hp0, ow0, ob0))
    y0_ref = phq_forward_ref(x_small, hp0, ow0, ob0)
    assert jnp.allclose(y0, y0_ref, atol=3e-5, rtol=1e-4)

    print("KERNEL_OK")
</pallas_src>

<mosaic_0001>
module attributes {stable_mosaic.version = 11 : i64} {
  func.func @_mlp_kernel(%arg0: i32, %arg1: memref<8x128xf32, #tpu.memory_space<vmem>>, %arg2: memref<128x128xf32, #tpu.memory_space<vmem>>, %arg3: memref<1x128xf32, #tpu.memory_space<vmem>>, %arg4: memref<128x128xf32, #tpu.memory_space<vmem>>, %arg5: memref<1x128xf32, #tpu.memory_space<vmem>>, %arg6: memref<128x64xf32, #tpu.memory_space<vmem>>, %arg7: memref<1x64xf32, #tpu.memory_space<vmem>>, %arg8: memref<64x4xf32, #tpu.memory_space<vmem>>, %arg9: memref<1x4xf32, #tpu.memory_space<vmem>>, %arg10: memref<8x4xf32, #tpu.memory_space<vmem>>) attributes {dimension_semantics = [#tpu.dimension_semantics<parallel>], iteration_bounds = array<i64: 1>, scalar_prefetch = 0 : i64, scratch_operands = 0 : i64, tpu.core_type = #tpu.core_type<tc>, window_params = [{transform_indices = @transform_0, window_bounds = array<i64: 8, 128>}, {pipeline_mode = #tpu.pipeline_mode<synchronous>, transform_indices = @transform_1, window_bounds = array<i64: 128, 128>}, {pipeline_mode = #tpu.pipeline_mode<synchronous>, transform_indices = @transform_2, window_bounds = array<i64: 1, 128>}, {pipeline_mode = #tpu.pipeline_mode<synchronous>, transform_indices = @transform_3, window_bounds = array<i64: 128, 128>}, {pipeline_mode = #tpu.pipeline_mode<synchronous>, transform_indices = @transform_4, window_bounds = array<i64: 1, 128>}, {pipeline_mode = #tpu.pipeline_mode<synchronous>, transform_indices = @transform_5, window_bounds = array<i64: 128, 64>}, {pipeline_mode = #tpu.pipeline_mode<synchronous>, transform_indices = @transform_6, window_bounds = array<i64: 1, 64>}, {pipeline_mode = #tpu.pipeline_mode<synchronous>, transform_indices = @transform_7, window_bounds = array<i64: 64, 4>}, {pipeline_mode = #tpu.pipeline_mode<synchronous>, transform_indices = @transform_8, window_bounds = array<i64: 1, 4>}, {transform_indices = @transform_9, window_bounds = array<i64: 8, 4>}]} {
    %c0 = arith.constant 0 : index
    %c0_0 = arith.constant 0 : index
    %0 = vector.load %arg1[%c0, %c0_0] : memref<8x128xf32, #tpu.memory_space<vmem>>, vector<8x128xf32>
    %c0_1 = arith.constant 0 : index
    %c0_2 = arith.constant 0 : index
    %1 = vector.load %arg2[%c0_1, %c0_2] : memref<128x128xf32, #tpu.memory_space<vmem>>, vector<128x128xf32>
    %c0_3 = arith.constant 0 : index
    %c0_4 = arith.constant 0 : index
    %2 = vector.load %arg3[%c0_3, %c0_4] : memref<1x128xf32, #tpu.memory_space<vmem>>, vector<1x128xf32>
    %cst = arith.constant dense<0.000000e+00> : vector<8x128xf32>
    %3 = tpu.matmul %0, %1, %cst {dimension_numbers = #tpu.dot_dimension_numbers<[1], [0], [0], [1], [0, 0, 1, 1], [], []>} : vector<8x128xf32>, vector<128x128xf32>, vector<8x128xf32> -> vector<8x128xf32>
    %4 = vector.broadcast %2 : vector<1x128xf32> to vector<8x128xf32>
    %5 = arith.addf %3, %4 : vector<8x128xf32>
    %cst_5 = arith.constant 0.000000e+00 : f32
    %6 = vector.broadcast %cst_5 : f32 to vector<8x128xf32>
    %7 = arith.maximumf %5, %6 : vector<8x128xf32>
    %c0_6 = arith.constant 0 : index
    %c0_7 = arith.constant 0 : index
    %8 = vector.load %arg4[%c0_6, %c0_7] : memref<128x128xf32, #tpu.memory_space<vmem>>, vector<128x128xf32>
    %c0_8 = arith.constant 0 : index
    %c0_9 = arith.constant 0 : index
    %9 = vector.load %arg5[%c0_8, %c0_9] : memref<1x128xf32, #tpu.memory_space<vmem>>, vector<1x128xf32>
    %cst_10 = arith.constant dense<0.000000e+00> : vector<8x128xf32>
    %10 = tpu.matmul %7, %8, %cst_10 {dimension_numbers = #tpu.dot_dimension_numbers<[1], [0], [0], [1], [0, 0, 1, 1], [], []>} : vector<8x128xf32>, vector<128x128xf32>, vector<8x128xf32> -> vector<8x128xf32>
    %11 = vector.broadcast %9 : vector<1x128xf32> to vector<8x128xf32>
    %12 = arith.addf %10, %11 : vector<8x128xf32>
    %cst_11 = arith.constant 0.000000e+00 : f32
    %13 = vector.broadcast %cst_11 : f32 to vector<8x128xf32>
    %14 = arith.maximumf %12, %13 : vector<8x128xf32>
    %c0_12 = arith.constant 0 : index
    %c0_13 = arith.constant 0 : index
    %15 = vector.load %arg6[%c0_12, %c0_13] : memref<128x64xf32, #tpu.memory_space<vmem>>, vector<128x64xf32>
    %c0_14 = arith.constant 0 : index
    %c0_15 = arith.constant 0 : index
    %16 = vector.load %arg7[%c0_14, %c0_15] : memref<1x64xf32, #tpu.memory_space<vmem>>, vector<1x64xf32>
    %cst_16 = arith.constant dense<0.000000e+00> : vector<8x64xf32>
    %17 = tpu.matmul %14, %15, %cst_16 {dimension_numbers = #tpu.dot_dimension_numbers<[1], [0], [0], [1], [0, 0, 1, 1], [], []>} : vector<8x128xf32>, vector<128x64xf32>, vector<8x64xf32> -> vector<8x64xf32>
    %18 = vector.broadcast %16 : vector<1x64xf32> to vector<8x64xf32>
    %19 = arith.addf %17, %18 : vector<8x64xf32>
    %cst_17 = arith.constant 0.000000e+00 : f32
    %20 = vector.broadcast %cst_17 : f32 to vector<8x64xf32>
    %21 = arith.maximumf %19, %20 : vector<8x64xf32>
    %c0_18 = arith.constant 0 : index
    %c0_19 = arith.constant 0 : index
    %22 = vector.load %arg8[%c0_18, %c0_19] : memref<64x4xf32, #tpu.memory_space<vmem>>, vector<64x4xf32>
    %c0_20 = arith.constant 0 : index
    %c0_21 = arith.constant 0 : index
    %23 = vector.load %arg9[%c0_20, %c0_21] : memref<1x4xf32, #tpu.memory_space<vmem>>, vector<1x4xf32>
    %cst_22 = arith.constant dense<0.000000e+00> : vector<8x4xf32>
    %24 = tpu.matmul %21, %22, %cst_22 {dimension_numbers = #tpu.dot_dimension_numbers<[1], [0], [0], [1], [0, 0, 1, 1], [], []>} : vector<8x64xf32>, vector<64x4xf32>, vector<8x4xf32> -> vector<8x4xf32>
    %25 = vector.broadcast %23 : vector<1x4xf32> to vector<8x4xf32>
    %26 = arith.addf %24, %25 : vector<8x4xf32>
    %c0_23 = arith.constant 0 : index
    %c0_24 = arith.constant 0 : index
    %27 = vector.load %arg10[%c0_23, %c0_24] : memref<8x4xf32, #tpu.memory_space<vmem>>, vector<8x4xf32>
    tpu.vector_store %arg10[%c0_23, %c0_24], %26 {strides = array<i32>} : memref<8x4xf32, #tpu.memory_space<vmem>>, vector<8x4xf32>,
    return
  }
  func.func @transform_0(%arg0: i32) -> (i32, i32) {
    %c0_i32 = arith.constant 0 : i32
    %c0_i32_0 = arith.constant 0 : i32
    return %arg0, %c0_i32 : i32, i32
  }
  func.func @transform_1(%arg0: i32) -> (i32, i32) {
    %c0_i32 = arith.constant 0 : i32
    %c0_i32_0 = arith.constant 0 : i32
    %c0_i32_1 = arith.constant 0 : i32
    return %c0_i32, %c0_i32_0 : i32, i32
  }
  func.func @transform_2(%arg0: i32) -> (i32, i32) {
    %c0_i32 = arith.constant 0 : i32
    %c0_i32_0 = arith.constant 0 : i32
    %c0_i32_1 = arith.constant 0 : i32
    return %c0_i32, %c0_i32_0 : i32, i32
  }
  func.func @transform_3(%arg0: i32) -> (i32, i32) {
    %c0_i32 = arith.constant 0 : i32
    %c0_i32_0 = arith.constant 0 : i32
    %c0_i32_1 = arith.constant 0 : i32
    return %c0_i32, %c0_i32_0 : i32, i32
  }
  func.func @transform_4(%arg0: i32) -> (i32, i32) {
    %c0_i32 = arith.constant 0 : i32
    %c0_i32_0 = arith.constant 0 : i32
    %c0_i32_1 = arith.constant 0 : i32
    return %c0_i32, %c0_i32_0 : i32, i32
  }
  func.func @transform_5(%arg0: i32) -> (i32, i32) {
    %c0_i32 = arith.constant 0 : i32
    %c0_i32_0 = arith.constant 0 : i32
    %c0_i32_1 = arith.constant 0 : i32
    return %c0_i32, %c0_i32_0 : i32, i32
  }
  func.func @transform_6(%arg0: i32) -> (i32, i32) {
    %c0_i32 = arith.constant 0 : i32
    %c0_i32_0 = arith.constant 0 : i32
    %c0_i32_1 = arith.constant 0 : i32
    return %c0_i32, %c0_i32_0 : i32, i32
  }
  func.func @transform_7(%arg0: i32) -> (i32, i32) {
    %c0_i32 = arith.constant 0 : i32
    %c0_i32_0 = arith.constant 0 : i32
    %c0_i32_1 = arith.constant 0 : i32
    return %c0_i32, %c0_i32_0 : i32, i32
  }
  func.func @transform_8(%arg0: i32) -> (i32, i32) {
    %c0_i32 = arith.constant 0 : i32
    %c0_i32_0 = arith.constant 0 : i32
    %c0_i32_1 = arith.constant 0 : i32
    return %c0_i32, %c0_i32_0 : i32, i32
  }
  func.func @transform_9(%arg0: i32) -> (i32, i32) {
    %c0_i32 = arith.constant 0 : i32
    %c0_i32_0 = arith.constant 0 : i32
    return %arg0, %c0_i32 : i32, i32
  }
}

</mosaic_0001>

<llo_original>
// kernel: tpu_custom_call.1
$region0: #{tpu_custom_call.1}
  #allocation0 [shape = 'u32[]', space=smem, size = 0x4, offset = 0x4, fixed_abs, tag = 'smem constant byte address 0x4 - core index']
  #allocation1 [shape = 'u32[144,128]{1,0:T(1,128)}', space=vmem, size = 0x12000, scoped, tag = 'internal scratch']
  %s0 = inlined_call_operand.hbm [shape: f32[2,128], index: 0, kind: input, shape index: {}]
  %s1 = inlined_call_operand.hbm [shape: f32[128,128], index: 1, kind: input, shape index: {}]
  %s2 = inlined_call_operand.hbm [shape: f32[1,128], index: 2, kind: input, shape index: {}]
  %s3 = inlined_call_operand.hbm [shape: f32[128,128], index: 3, kind: input, shape index: {}]
  %s4 = inlined_call_operand.hbm [shape: f32[1,128], index: 4, kind: input, shape index: {}]
  %s5 = inlined_call_operand.hbm [shape: f32[128,64], index: 5, kind: input, shape index: {}]
  %s6 = inlined_call_operand.hbm [shape: f32[1,64], index: 6, kind: input, shape index: {}]
  %s7 = inlined_call_operand.hbm [shape: f32[64,4], index: 7, kind: input, shape index: {}]
  %s8 = inlined_call_operand.hbm [shape: f32[1,4], index: 8, kind: input, shape index: {}]
  %s9 = inlined_call_operand.hbm [shape: f32[2,4], index: 9, kind: output, shape index: {}]
  %s10 = sld [smem:[#allocation0]]
  $region82: #{tpu_custom_call.1} parent=0
    _
  %s12 = ssub.s32 1, %s10
  %s13 = scalar_select 0, %s12, %s10
  $region1: #{tpu_custom_call.1} parent=0
    #allocation2 [shape = 'u8[4096]{0}', space=vmem, size = 0x1000, scoped, tag = 'input window, operand 0, single buffered']
    #allocation3 [shape = 's32[1]{0}', space=sflag, size = 0x4, scoped, tag = 'scoped memory for tpu_custom_call.1']
    #allocation4 [shape = 's32[1]{0}', space=sflag, size = 0x4, scoped, tag = 'scoped memory for tpu_custom_call.1']
    #allocation5 [shape = 'u8[65536]{0}', space=vmem, size = 0x10000, scoped, tag = 'input window, operand 1, single buffered']
    #allocation6 [shape = 's32[1]{0}', space=sflag, size = 0x4, scoped, tag = 'scoped memory for tpu_custom_call.1']
    #allocation7 [shape = 'u8[512]{0}', space=vmem, size = 0x400, scoped, tag = 'input window, operand 2, single buffered']
    #allocation8 [shape = 'u8[65536]{0}', space=vmem, size = 0x10000, scoped, tag = 'input window, operand 3, single buffered']
    #allocation9 [shape = 's32[1]{0}', space=sflag, size = 0x4, scoped, tag = 'scoped memory for tpu_custom_call.1']
    #allocation10 [shape = 'u8[512]{0}', space=vmem, size = 0x400, scoped, tag = 'input window, operand 4, single buffered']
    #allocation11 [shape = 'u8[65536]{0}', space=vmem, size = 0x10000, scoped, tag = 'input window, operand 5, single buffered']
    #allocation12 [shape = 's32[1]{0}', space=sflag, size = 0x4, scoped, tag = 'scoped memory for tpu_custom_call.1']
    #allocation13 [shape = 'u8[512]{0}', space=vmem, size = 0x400, scoped, tag = 'input window, operand 6, single buffered']
    #allocation14 [shape = 'u8[32768]{0}', space=vmem, size = 0x8000, scoped, tag = 'input window, operand 7, single buffered']
    #allocation15 [shape = 's32[1]{0}', space=sflag, size = 0x4, scoped, tag = 'scoped memory for tpu_custom_call.1']
    #allocation16 [shape = 'u8[512]{0}', space=vmem, size = 0x400, scoped, tag = 'input window, operand 8, single buffered']
    #allocation17 [shape = 'u8[4096]{0}', space=vmem, size = 0x1000, scoped, tag = 'output window, operand 0, single buffered']
    %14 = vsyncpa [#allocation3], 0
    %15 = vsyncpa [#allocation6], 0
    %16 = vsyncpa [#allocation9], 0
    %17 = vsyncpa [#allocation12], 0
    %18 = vsyncpa [#allocation15], 0
    %19 = vsyncpa [#allocation4], 0
    // Predicated region
    $region2: #{tpu_custom_call.1} parent=1 // pred_check
      _
    $region3: #{tpu_custom_call.1} parent=1 // pred_check_branch
      %21 = sbr.rel (0) target = $region5
    $region4: #{tpu_custom_call.1} parent=1 // pred_region
      %s23 = ssub.s32 128, 32
      %24 = vsyncadd [#allocation3], %s23
      %s25 = sshll.u32 [#allocation2], 4
      %s26 = int_to_ptr.vmem [resolvable:$true] %s25
      %31 = dma.hbm_to_vmem [thread:$0]  %s0, 32, %s26, [#allocation3], 32, 32, 2
    $region5: #{tpu_custom_call.1} parent=1 // pred_fallthru
      _
    // Predicated region
    $region6: #{tpu_custom_call.1} parent=1 // pred_check
      _
    $region7: #{tpu_custom_call.1} parent=1 // pred_check_branch
      %33 = sbr.rel (0) target = $region9
    $region8: #{tpu_custom_call.1} parent=1 // pred_region
      %s35 = ssub.s32 2048, 2048
      %36 = vsyncadd [#allocation6], %s35
      %s37 = sshll.u32 [#allocation5], 4
      %s38 = int_to_ptr.vmem [resolvable:$true] %s37
      %43 = dma.hbm_to_vmem [thread:$0]  %s1, 2048, %s38, [#allocation6], 128, 128, 8
    $region9: #{tpu_custom_call.1} parent=1 // pred_fallthru
      _
    // Predicated region
    $region10: #{tpu_custom_call.1} parent=1 // pred_check
      _
    $region11: #{tpu_custom_call.1} parent=1 // pred_check_branch
      %45 = sbr.rel (0) target = $region13
    $region12: #{tpu_custom_call.1} parent=1 // pred_region
      %s47 = ssub.s32 16, 16
      %48 = vsyncadd [#allocation6], %s47
      %s50 = sshll.u32 [#allocation7], 4
      %s51 = int_to_ptr.vmem [resolvable:$true] %s50
      %53 = dma.hbm_to_vmem [thread:$0]  %s2, 16, %s51, [#allocation6]
    $region13: #{tpu_custom_call.1} parent=1 // pred_fallthru
      _
    // Predicated region
    $region14: #{tpu_custom_call.1} parent=1 // pred_check
      _
    $region15: #{tpu_custom_call.1} parent=1 // pred_check_branch
      %55 = sbr.rel (0) target = $region17
    $region16: #{tpu_custom_call.1} parent=1 // pred_region
      %s57 = ssub.s32 2048, 2048
      %58 = vsyncadd [#allocation9], %s57
      %s59 = sshll.u32 [#allocation8], 4
      %s60 = int_to_ptr.vmem [resolvable:$true] %s59
      %65 = dma.hbm_to_vmem [thread:$0]  %s3, 2048, %s60, [#allocation9], 128, 128, 8
    $region17: #{tpu_custom_call.1} parent=1 // pred_fallthru
      _
    // Predicated region
    $region18: #{tpu_custom_call.1} parent=1 // pred_check
      _
    $region19: #{tpu_custom_call.1} parent=1 // pred_check_branch
      %67 = sbr.rel (0) target = $region21
    $region20: #{tpu_custom_call.1} parent=1 // pred_region
      %s69 = ssub.s32 16, 16
      %70 = vsyncadd [#allocation9], %s69
      %s72 = sshll.u32 [#allocation10], 4
      %s73 = int_to_ptr.vmem [resolvable:$true] %s72
      %75 = dma.hbm_to_vmem [thread:$0]  %s4, 16, %s73, [#allocation9]
    $region21: #{tpu_custom_call.1} parent=1 // pred_fallthru
      _
    // Predicated region
    $region22: #{tpu_custom_call.1} parent=1 // pred_check
      _
    $region23: #{tpu_custom_call.1} parent=1 // pred_check_branch
      %77 = sbr.rel (0) target = $region25
    $region24: #{tpu_custom_call.1} parent=1 // pred_region
      %s79 = ssub.s32 2048, 2048
      %80 = vsyncadd [#allocation12], %s79
      %s81 = sshll.u32 [#allocation11], 4
      %s82 = int_to_ptr.vmem [resolvable:$true] %s81
      %87 = dma.hbm_to_vmem [thread:$0]  %s5, 2048, %s82, [#allocation12], 128, 128, 8
    $region25: #{tpu_custom_call.1} parent=1 // pred_fallthru
      _
    // Predicated region
    $region26: #{tpu_custom_call.1} parent=1 // pred_check
      _
    $region27: #{tpu_custom_call.1} parent=1 // pred_check_branch
      %89 = sbr.rel (0) target = $region29
    $region28: #{tpu_custom_call.1} parent=1 // pred_region
      %s91 = ssub.s32 16, 16
      %92 = vsyncadd [#allocation12], %s91
      %s94 = sshll.u32 [#allocation13], 4
      %s95 = int_to_ptr.vmem [resolvable:$true] %s94
      %97 = dma.hbm_to_vmem [thread:$0]  %s6, 16, %s95, [#allocation12]
    $region29: #{tpu_custom_call.1} parent=1 // pred_fallthru
      _
    // Predicated region
    $region30: #{tpu_custom_call.1} parent=1 // pred_check
      _
    $region31: #{tpu_custom_call.1} parent=1 // pred_check_branch
      %99 = sbr.rel (0) target = $region33
    $region32: #{tpu_custom_call.1} parent=1 // pred_region
      %s101 = ssub.s32 1024, 1024
      %102 = vsyncadd [#allocation15], %s101
      %s103 = sshll.u32 [#allocation14], 4
      %s104 = int_to_ptr.vmem [resolvable:$true] %s103
      %109 = dma.hbm_to_vmem [thread:$0]  %s7, 1024, %s104, [#allocation15], 128, 128, 8
    $region33: #{tpu_custom_call.1} parent=1 // pred_fallthru
      _
    // Predicated region
    $region34: #{tpu_custom_call.1} parent=1 // pred_check
      _
    $region35: #{tpu_custom_call.1} parent=1 // pred_check_branch
      %111 = sbr.rel (0) target = $region37
    $region36: #{tpu_custom_call.1} parent=1 // pred_region
      %s113 = ssub.s32 16, 16
      %114 = vsyncadd [#allocation15], %s113
      %s116 = sshll.u32 [#allocation16], 4
      %s117 = int_to_ptr.vmem [resolvable:$true] %s116
      %119 = dma.hbm_to_vmem [thread:$0]  %s8, 16, %s117, [#allocation15]
    $region37: #{tpu_custom_call.1} parent=1 // pred_fallthru
      _
    // Predicated region
    $region38: #{tpu_custom_call.1} parent=1 // pred_check
      _
    $region39: #{tpu_custom_call.1} parent=1 // pred_check_branch
      %121 = sbr.rel (0) target = $region41
    $region40: #{tpu_custom_call.1} parent=1 // pred_region
      %122 = dma.done [#allocation3], 128
    $region41: #{tpu_custom_call.1} parent=1 // pred_fallthru
      _
    // Predicated region
    $region42: #{tpu_custom_call.1} parent=1 // pred_check
      _
    $region43: #{tpu_custom_call.1} parent=1 // pred_check_branch
      %124 = sbr.rel (0) target = $region45
    $region44: #{tpu_custom_call.1} parent=1 // pred_region
      %125 = dma.done [#allocation6], 2048
    $region45: #{tpu_custom_call.1} parent=1 // pred_fallthru
      _
    // Predicated region
    $region46: #{tpu_custom_call.1} parent=1 // pred_check
      _
    $region47: #{tpu_custom_call.1} parent=1 // pred_check_branch
      %127 = sbr.rel (0) target = $region49
    $region48: #{tpu_custom_call.1} parent=1 // pred_region
      %128 = dma.done [#allocation6], 16
    $region49: #{tpu_custom_call.1} parent=1 // pred_fallthru
      _
    // Predicated region
    $region50: #{tpu_custom_call.1} parent=1 // pred_check
      _
    $region51: #{tpu_custom_call.1} parent=1 // pred_check_branch
      %130 = sbr.rel (0) target = $region53
    $region52: #{tpu_custom_call.1} parent=1 // pred_region
      %131 = dma.done [#allocation9], 2048
    $region53: #{tpu_custom_call.1} parent=1 // pred_fallthru
      _
    // Predicated region
    $region54: #{tpu_custom_call.1} parent=1 // pred_check
      _
    $region55: #{tpu_custom_call.1} parent=1 // pred_check_branch
      %133 = sbr.rel (0) target = $region57
    $region56: #{tpu_custom_call.1} parent=1 // pred_region
      %134 = dma.done [#allocation9], 16
    $region57: #{tpu_custom_call.1} parent=1 // pred_fallthru
      _
    // Predicated region
    $region58: #{tpu_custom_call.1} parent=1 // pred_check
      _
    $region59: #{tpu_custom_call.1} parent=1 // pred_check_branch
      %136 = sbr.rel (0) target = $region61
    $region60: #{tpu_custom_call.1} parent=1 // pred_region
      %137 = dma.done [#allocation12], 2048
    $region61: #{tpu_custom_call.1} parent=1 // pred_fallthru
      _
    // Predicated region
    $region62: #{tpu_custom_call.1} parent=1 // pred_check
      _
    $region63: #{tpu_custom_call.1} parent=1 // pred_check_branch
      %139 = sbr.rel (0) target = $region65
    $region64: #{tpu_custom_call.1} parent=1 // pred_region
      %140 = dma.done [#allocation12], 16
    $region65: #{tpu_custom_call.1} parent=1 // pred_fallthru
      _
    // Predicated region
    $region66: #{tpu_custom_call.1} parent=1 // pred_check
      _
    $region67: #{tpu_custom_call.1} parent=1 // pred_check_branch
      %142 = sbr.rel (0) target = $region69
    $region68: #{tpu_custom_call.1} parent=1 // pred_region
      %143 = dma.done [#allocation15], 1024
    $region69: #{tpu_custom_call.1} parent=1 // pred_fallthru
      _
    // Predicated region
    $region70: #{tpu_custom_call.1} parent=1 // pred_check
      _
    $region71: #{tpu_custom_call.1} parent=1 // pred_check_branch
      %145 = sbr.rel (0) target = $region73
    $region72: #{tpu_custom_call.1} parent=1 // pred_region
      %146 = dma.done [#allocation15], 16
    $region73: #{tpu_custom_call.1} parent=1 // pred_fallthru
      _
    %v147 = vld [vmem:[#allocation2] sm:$0xff]
    %v148 = vld [vmem:[#allocation5] sm:$0xff]
    %v149 = vld [vmem:[#allocation5 + $0x8] sm:$0xff]
    %v150 = vld [vmem:[#allocation5 + $0x10] sm:$0xff]
    %v151 = vld [vmem:[#allocation5 + $0x18] sm:$0xff]
    %v152 = vld [vmem:[#allocation5 + $0x20] sm:$0xff]
    %v153 = vld [vmem:[#allocation5 + $0x28] sm:$0xff]
    %v154 = vld [vmem:[#allocation5 + $0x30] sm:$0xff]
    %v155 = vld [vmem:[#allocation5 + $0x38] sm:$0xff]
    %v156 = vld [vmem:[#allocation5 + $0x40] sm:$0xff]
    %v157 = vld [vmem:[#allocation5 + $0x48] sm:$0xff]
    %v158 = vld [vmem:[#allocation5 + $0x50] sm:$0xff]
    %v159 = vld [vmem:[#allocation5 + $0x58] sm:$0xff]
    %v160 = vld [vmem:[#allocation5 + $0x60] sm:$0xff]
    %v161 = vld [vmem:[#allocation5 + $0x68] sm:$0xff]
    %v162 = vld [vmem:[#allocation5 + $0x70] sm:$0xff]
    %v163 = vld [vmem:[#allocation5 + $0x78] sm:$0xff]
    %v164 = vld [vmem:[#allocation7] sm:$0x1]
    %v166 = vlaneseq
    %v167 = vshrl.u32 %v166, 7
    %v168 = vsub.s32 0, %v167
    %v169 = vrot.slane %v164, %v168
    %171 = vmatprep.subr.mxu0 0.0
    %172 = vmatpush1.msra.mxu0 %v148
    %173 = vmatprep.subr.mxu0 0.0
    %174 = vmatpush1.msra.mxu0 %v149
    %175 = vmatprep.subr.mxu0 0.0
    %176 = vmatpush1.msra.mxu0 %v150
    %177 = vmatprep.subr.mxu0 0.0
    %178 = vmatpush1.msra.mxu0 %v151
    %179 = vmatprep.subr.mxu0 0.0
    %180 = vmatpush1.msra.mxu0 %v152
    %181 = vmatprep.subr.mxu0 0.0
    %182 = vmatpush1.msra.mxu0 %v153
    %183 = vmatprep.subr.mxu0 0.0
    %184 = vmatpush1.msra.mxu0 %v154
    %185 = vmatprep.subr.mxu0 0.0
    %186 = vmatpush1.msra.mxu0 %v155
    %187 = vmatprep.subr.mxu0 0.0
    %188 = vmatpush1.msra.mxu0 %v156
    %189 = vmatprep.subr.mxu0 0.0
    %190 = vmatpush1.msra.mxu0 %v157
    %191 = vmatprep.subr.mxu0 0.0
    %192 = vmatpush1.msra.mxu0 %v158
    %193 = vmatprep.subr.mxu0 0.0
    %194 = vmatpush1.msra.mxu0 %v159
    %195 = vmatprep.subr.mxu0 0.0
    %196 = vmatpush1.msra.mxu0 %v160
    %197 = vmatprep.subr.mxu0 0.0
    %198 = vmatpush1.msra.mxu0 %v161
    %199 = vmatprep.subr.mxu0 0.0
    %200 = vmatpush1.msra.mxu0 %v162
    %201 = vmatprep.subr.mxu0 0.0
    %202 = vmatpush1.msra.mxu0 %v163
    %203 = vmatprep.subr.mxu0 0.0
    %204 = vmatpush1.msra.mxu0 0.0
    %205 = vmatprep.subr.mxu0 0.0
    %206 = vmatpush1.msra.mxu0 0.0
    %207 = vmatprep.subr.mxu0 0.0
    %208 = vmatpush1.msra.mxu0 0.0
    %209 = vmatprep.subr.mxu0 0.0
    %210 = vmatpush1.msra.mxu0 0.0
    %211 = vmatprep.subr.mxu0 0.0
    %212 = vmatpush1.msra.mxu0 0.0
    %213 = vmatprep.subr.mxu0 0.0
    %214 = vmatpush1.msra.mxu0 0.0
    %215 = vmatprep.subr.mxu0 0.0
    %216 = vmatpush1.msra.mxu0 0.0
    %217 = vmatprep.subr.mxu0 0.0
    %218 = vmatpush1.msra.mxu0 0.0
    %219 = vmatprep.subr.mxu0 0.0
    %220 = vmatpush1.msra.mxu0 0.0
    %221 = vmatprep.subr.mxu0 0.0
    %222 = vmatpush1.msra.mxu0 0.0
    %223 = vmatprep.subr.mxu0 0.0
    %224 = vmatpush1.msra.mxu0 0.0
    %225 = vmatprep.subr.mxu0 0.0
    %226 = vmatpush1.msra.mxu0 0.0
    %227 = vmatprep.subr.mxu0 0.0
    %228 = vmatpush1.msra.mxu0 0.0
    %229 = vmatprep.subr.mxu0 0.0
    %230 = vmatpush1.msra.mxu0 0.0
    %231 = vmatprep.subr.mxu0 0.0
    %232 = vmatpush1.msra.mxu0 0.0
    %233 = vmatprep.subr.mxu0 0.0
    %234 = vmatpush1.msra.mxu0 0.0
    %235 = vmatprep.mubr.f32.mxu0 0.0
    %236 = vmatmul.mubr.f32.gmra.mrb[0].mxu0 %v147
    %v237 = vpop.f32.mrb[0].mxu0
    %v238 = vadd.f32 %v169, %v237
    %v239 = vpop.f32.mrb[0].mxu0
    %240 = vdwg.mxu0
    %v241 = vmax.f32 %v238, 0.0
    %v242 = vld [vmem:[#allocation8] sm:$0xff]
    %v243 = vld [vmem:[#allocation8 + $0x8] sm:$0xff]
    %v244 = vld [vmem:[#allocation8 + $0x10] sm:$0xff]
    %v245 = vld [vmem:[#allocation8 + $0x18] sm:$0xff]
    %v246 = vld [vmem:[#allocation8 + $0x20] sm:$0xff]
    %v247 = vld [vmem:[#allocation8 + $0x28] sm:$0xff]
    %v248 = vld [vmem:[#allocation8 + $0x30] sm:$0xff]
    %v249 = vld [vmem:[#allocation8 + $0x38] sm:$0xff]
    %v250 = vld [vmem:[#allocation8 + $0x40] sm:$0xff]
    %v251 = vld [vmem:[#allocation8 + $0x48] sm:$0xff]
    %v252 = vld [vmem:[#allocation8 + $0x50] sm:$0xff]
    %v253 = vld [vmem:[#allocation8 + $0x58] sm:$0xff]
    %v254 = vld [vmem:[#allocation8 + $0x60] sm:$0xff]
    %v255 = vld [vmem:[#allocation8 + $0x68] sm:$0xff]
    %v256 = vld [vmem:[#allocation8 + $0x70] sm:$0xff]
    %v257 = vld [vmem:[#allocation8 + $0x78] sm:$0xff]
    %v258 = vld [vmem:[#allocation10] sm:$0x1]
    %v260 = vlaneseq
    %v261 = vshrl.u32 %v260, 7
    %v262 = vsub.s32 0, %v261
    %v263 = vrot.slane %v258, %v262
    %265 = vmatprep.subr.mxu0 0.0
    %266 = vmatpush1.msra.mxu0 %v242
    %267 = vmatprep.subr.mxu0 0.0
    %268 = vmatpush1.msra.mxu0 %v243
    %269 = vmatprep.subr.mxu0 0.0
    %270 = vmatpush1.msra.mxu0 %v244
    %271 = vmatprep.subr.mxu0 0.0
    %272 = vmatpush1.msra.mxu0 %v245
    %273 = vmatprep.subr.mxu0 0.0
    %274 = vmatpush1.msra.mxu0 %v246
    %275 = vmatprep.subr.mxu0 0.0
    %276 = vmatpush1.msra.mxu0 %v247
    %277 = vmatprep.subr.mxu0 0.0
    %278 = vmatpush1.msra.mxu0 %v248
    %279 = vmatprep.subr.mxu0 0.0
    %280 = vmatpush1.msra.mxu0 %v249
    %281 = vmatprep.subr.mxu0 0.0
    %282 = vmatpush1.msra.mxu0 %v250
    %283 = vmatprep.subr.mxu0 0.0
    %284 = vmatpush1.msra.mxu0 %v251
    %285 = vmatprep.subr.mxu0 0.0
    %286 = vmatpush1.msra.mxu0 %v252
    %287 = vmatprep.subr.mxu0 0.0
    %288 = vmatpush1.msra.mxu0 %v253
    %289 = vmatprep.subr.mxu0 0.0
    %290 = vmatpush1.msra.mxu0 %v254
    %291 = vmatprep.subr.mxu0 0.0
    %292 = vmatpush1.msra.mxu0 %v255
    %293 = vmatprep.subr.mxu0 0.0
    %294 = vmatpush1.msra.mxu0 %v256
    %295 = vmatprep.subr.mxu0 0.0
    %296 = vmatpush1.msra.mxu0 %v257
    %297 = vmatprep.subr.mxu0 0.0
    %298 = vmatpush1.msra.mxu0 0.0
    %299 = vmatprep.subr.mxu0 0.0
    %300 = vmatpush1.msra.mxu0 0.0
    %301 = vmatprep.subr.mxu0 0.0
    %302 = vmatpush1.msra.mxu0 0.0
    %303 = vmatprep.subr.mxu0 0.0
    %304 = vmatpush1.msra.mxu0 0.0
    %305 = vmatprep.subr.mxu0 0.0
    %306 = vmatpush1.msra.mxu0 0.0
    %307 = vmatprep.subr.mxu0 0.0
    %308 = vmatpush1.msra.mxu0 0.0
    %309 = vmatprep.subr.mxu0 0.0
    %310 = vmatpush1.msra.mxu0 0.0
    %311 = vmatprep.subr.mxu0 0.0
    %312 = vmatpush1.msra.mxu0 0.0
    %313 = vmatprep.subr.mxu0 0.0
    %314 = vmatpush1.msra.mxu0 0.0
    %315 = vmatprep.subr.mxu0 0.0
    %316 = vmatpush1.msra.mxu0 0.0
    %317 = vmatprep.subr.mxu0 0.0
    %318 = vmatpush1.msra.mxu0 0.0
    %319 = vmatprep.subr.mxu0 0.0
    %320 = vmatpush1.msra.mxu0 0.0
    %321 = vmatprep.subr.mxu0 0.0
    %322 = vmatpush1.msra.mxu0 0.0
    %323 = vmatprep.subr.mxu0 0.0
    %324 = vmatpush1.msra.mxu0 0.0
    %325 = vmatprep.subr.mxu0 0.0
    %326 = vmatpush1.msra.mxu0 0.0
    %327 = vmatprep.subr.mxu0 0.0
    %328 = vmatpush1.msra.mxu0 0.0
    %329 = vmatprep.mubr.f32.mxu0 0.0
    %330 = vmatmul.mubr.f32.gmra.mrb[0].mxu0 %v241
    %v331 = vpop.f32.mrb[0].mxu0
    %v332 = vadd.f32 %v263, %v331
    %v333 = vpop.f32.mrb[0].mxu0
    %334 = vdwg.mxu0
    %v335 = vmax.f32 %v332, 0.0
    %v336 = vld [vmem:[#allocation11] sm:$0xff]
    %v337 = vld [vmem:[#allocation11 + $0x8] sm:$0xff]
    %v338 = vld [vmem:[#allocation11 + $0x10] sm:$0xff]
    %v339 = vld [vmem:[#allocation11 + $0x18] sm:$0xff]
    %v340 = vld [vmem:[#allocation11 + $0x20] sm:$0xff]
    %v341 = vld [vmem:[#allocation11 + $0x28] sm:$0xff]
    %v342 = vld [vmem:[#allocation11 + $0x30] sm:$0xff]
    %v343 = vld [vmem:[#allocation11 + $0x38] sm:$0xff]
    %v344 = vld [vmem:[#allocation11 + $0x40] sm:$0xff]
    %v345 = vld [vmem:[#allocation11 + $0x48] sm:$0xff]
    %v346 = vld [vmem:[#allocation11 + $0x50] sm:$0xff]
    %v347 = vld [vmem:[#allocation11 + $0x58] sm:$0xff]
    %v348 = vld [vmem:[#allocation11 + $0x60] sm:$0xff]
    %v349 = vld [vmem:[#allocation11 + $0x68] sm:$0xff]
    %v350 = vld [vmem:[#allocation11 + $0x70] sm:$0xff]
    %v351 = vld [vmem:[#allocation11 + $0x78] sm:$0xff]
    %v352 = vld [vmem:[#allocation13] sm:$0x1]
    %v354 = vlaneseq
    %v355 = vshrl.u32 %v354, 7
    %v356 = vsub.s32 0, %v355
    %v357 = vrot.slane %v352, %v356
    %359 = vmatprep.subr.mxu0 0.0
    %360 = vmatpush1.msra.mxu0 %v336
    %361 = vmatprep.subr.mxu0 0.0
    %362 = vmatpush1.msra.mxu0 %v337
    %363 = vmatprep.subr.mxu0 0.0
    %364 = vmatpush1.msra.mxu0 %v338
    %365 = vmatprep.subr.mxu0 0.0
    %366 = vmatpush1.msra.mxu0 %v339
    %367 = vmatprep.subr.mxu0 0.0
    %368 = vmatpush1.msra.mxu0 %v340
    %369 = vmatprep.subr.mxu0 0.0
    %370 = vmatpush1.msra.mxu0 %v341
    %371 = vmatprep.subr.mxu0 0.0
    %372 = vmatpush1.msra.mxu0 %v342
    %373 = vmatprep.subr.mxu0 0.0
    %374 = vmatpush1.msra.mxu0 %v343
    %375 = vmatprep.subr.mxu0 0.0
    %376 = vmatpush1.msra.mxu0 %v344
    %377 = vmatprep.subr.mxu0 0.0
    %378 = vmatpush1.msra.mxu0 %v345
    %379 = vmatprep.subr.mxu0 0.0
    %380 = vmatpush1.msra.mxu0 %v346
    %381 = vmatprep.subr.mxu0 0.0
    %382 = vmatpush1.msra.mxu0 %v347
    %383 = vmatprep.subr.mxu0 0.0
    %384 = vmatpush1.msra.mxu0 %v348
    %385 = vmatprep.subr.mxu0 0.0
    %386 = vmatpush1.msra.mxu0 %v349
    %387 = vmatprep.subr.mxu0 0.0
    %388 = vmatpush1.msra.mxu0 %v350
    %389 = vmatprep.subr.mxu0 0.0
    %390 = vmatpush1.msra.mxu0 %v351
    %391 = vmatprep.subr.mxu0 0.0
    %392 = vmatpush1.msra.mxu0 0.0
    %393 = vmatprep.subr.mxu0 0.0
    %394 = vmatpush1.msra.mxu0 0.0
    %395 = vmatprep.subr.mxu0 0.0
    %396 = vmatpush1.msra.mxu0 0.0
    %397 = vmatprep.subr.mxu0 0.0
    %398 = vmatpush1.msra.mxu0 0.0
    %399 = vmatprep.subr.mxu0 0.0
    %400 = vmatpush1.msra.mxu0 0.0
    %401 = vmatprep.subr.mxu0 0.0
    %402 = vmatpush1.msra.mxu0 0.0
    %403 = vmatprep.subr.mxu0 0.0
    %404 = vmatpush1.msra.mxu0 0.0
    %405 = vmatprep.subr.mxu0 0.0
    %406 = vmatpush1.msra.mxu0 0.0
    %407 = vmatprep.subr.mxu0 0.0
    %408 = vmatpush1.msra.mxu0 0.0
    %409 = vmatprep.subr.mxu0 0.0
    %410 = vmatpush1.msra.mxu0 0.0
    %411 = vmatprep.subr.mxu0 0.0
    %412 = vmatpush1.msra.mxu0 0.0
    %413 = vmatprep.subr.mxu0 0.0
    %414 = vmatpush1.msra.mxu0 0.0
    %415 = vmatprep.subr.mxu0 0.0
    %416 = vmatpush1.msra.mxu0 0.0
    %417 = vmatprep.subr.mxu0 0.0
    %418 = vmatpush1.msra.mxu0 0.0
    %419 = vmatprep.subr.mxu0 0.0
    %420 = vmatpush1.msra.mxu0 0.0
    %421 = vmatprep.subr.mxu0 0.0
    %422 = vmatpush1.msra.mxu0 0.0
    %423 = vmatprep.mubr.f32.mxu0 0.0
    %424 = vmatmul.mubr.f32.gmra.mrb[0].mxu0 %v335
    %v425 = vpop.f32.mrb[0].mxu0
    %v426 = vadd.f32 %v357, %v425
    %v427 = vpop.f32.mrb[0].mxu0
    %428 = vdwg.mxu0
    %v429 = vmax.f32 %v426, 0.0
    %v430 = vld [vmem:[#allocation14] sm:$0xff]
    %v431 = vld [vmem:[#allocation14 + $0x8] sm:$0xff]
    %v432 = vld [vmem:[#allocation14 + $0x10] sm:$0xff]
    %v433 = vld [vmem:[#allocation14 + $0x18] sm:$0xff]
    %v434 = vld [vmem:[#allocation14 + $0x20] sm:$0xff]
    %v435 = vld [vmem:[#allocation14 + $0x28] sm:$0xff]
    %v436 = vld [vmem:[#allocation14 + $0x30] sm:$0xff]
    %v437 = vld [vmem:[#allocation14 + $0x38] sm:$0xff]
    %v438 = vld [vmem:[#allocation16] sm:$0x1]
    %v440 = vlaneseq
    %v441 = vshrl.u32 %v440, 7
    %v442 = vsub.s32 0, %v441
    %v443 = vrot.slane %v438, %v442
    %vm445 = vcmask 523264
    %v447 = vsel %vm445, %v429, 0
    %449 = vmatprep.subr.mxu0 0.0
    %450 = vmatpush1.msra.mxu0 %v430
    %451 = vmatprep.subr.mxu0 0.0
    %452 = vmatpush1.msra.mxu0 %v431
    %453 = vmatprep.subr.mxu0 0.0
    %454 = vmatpush1.msra.mxu0 %v432
    %455 = vmatprep.subr.mxu0 0.0
    %456 = vmatpush1.msra.mxu0 %v433
    %457 = vmatprep.subr.mxu0 0.0
    %458 = vmatpush1.msra.mxu0 %v434
    %459 = vmatprep.subr.mxu0 0.0
    %460 = vmatpush1.msra.mxu0 %v435
    %461 = vmatprep.subr.mxu0 0.0
    %462 = vmatpush1.msra.mxu0 %v436
    %463 = vmatprep.subr.mxu0 0.0
    %464 = vmatpush1.msra.mxu0 %v437
    %465 = vmatprep.subr.mxu0 0.0
    %466 = vmatpush1.msra.mxu0 0.0
    %467 = vmatprep.subr.mxu0 0.0
    %468 = vmatpush1.msra.mxu0 0.0
    %469 = vmatprep.subr.mxu0 0.0
    %470 = vmatpush1.msra.mxu0 0.0
    %471 = vmatprep.subr.mxu0 0.0
    %472 = vmatpush1.msra.mxu0 0.0
    %473 = vmatprep.subr.mxu0 0.0
    %474 = vmatpush1.msra.mxu0 0.0
    %475 = vmatprep.subr.mxu0 0.0
    %476 = vmatpush1.msra.mxu0 0.0
    %477 = vmatprep.subr.mxu0 0.0
    %478 = vmatpush1.msra.mxu0 0.0
    %479 = vmatprep.subr.mxu0 0.0
    %480 = vmatpush1.msra.mxu0 0.0
    %481 = vmatprep.subr.mxu0 0.0
    %482 = vmatpush1.msra.mxu0 0.0
    %483 = vmatprep.subr.mxu0 0.0
    %484 = vmatpush1.msra.mxu0 0.0
    %485 = vmatprep.subr.mxu0 0.0
    %486 = vmatpush1.msra.mxu0 0.0
    %487 = vmatprep.subr.mxu0 0.0
    %488 = vmatpush1.msra.mxu0 0.0
    %489 = vmatprep.subr.mxu0 0.0
    %490 = vmatpush1.msra.mxu0 0.0
    %491 = vmatprep.subr.mxu0 0.0
    %492 = vmatpush1.msra.mxu0 0.0
    %493 = vmatprep.subr.mxu0 0.0
    %494 = vmatpush1.msra.mxu0 0.0
    %495 = vmatprep.subr.mxu0 0.0
    %496 = vmatpush1.msra.mxu0 0.0
    %497 = vmatprep.subr.mxu0 0.0
    %498 = vmatpush1.msra.mxu0 0.0
    %499 = vmatprep.subr.mxu0 0.0
    %500 = vmatpush1.msra.mxu0 0.0
    %501 = vmatprep.subr.mxu0 0.0
    %502 = vmatpush1.msra.mxu0 0.0
    %503 = vmatprep.subr.mxu0 0.0
    %504 = vmatpush1.msra.mxu0 0.0
    %505 = vmatprep.subr.mxu0 0.0
    %506 = vmatpush1.msra.mxu0 0.0
    %507 = vmatprep.subr.mxu0 0.0
    %508 = vmatpush1.msra.mxu0 0.0
    %509 = vmatprep.subr.mxu0 0.0
    %510 = vmatpush1.msra.mxu0 0.0
    %511 = vmatprep.subr.mxu0 0.0
    %512 = vmatpush1.msra.mxu0 0.0
    %513 = vmatprep.mubr.f32.mxu0 0.0
    %514 = vmatmul.mubr.f32.gmra.mrb[0].mxu0 %v447
    %v515 = vpop.f32.mrb[0].mxu0
    %v516 = vadd.f32 %v443, %v515
    %v517 = vpop.f32.mrb[0].mxu0
    %518 = vdwg.mxu0
    %vm519 = vcmask 31744
    %520 = vst.msk [vmem:[#allocation17] sm:$0xff] %vm519, %v516
    // Predicated region
    $region74: #{tpu_custom_call.1} parent=1 // pred_check
      _
    $region75: #{tpu_custom_call.1} parent=1 // pred_check_branch
      %522 = sbr.rel (0) target = $region77
    $region76: #{tpu_custom_call.1} parent=1 // pred_region
      %s524 = ssub.s32 128, 32
      %525 = vsyncadd [#allocation4], %s524
      %s526 = sshll.u32 [#allocation17], 4
      %s527 = int_to_ptr.vmem [resolvable:$true] %s526
      %532 = dma.vmem_to_hbm [thread:$0]  %s527, 32, %s9, [#allocation4], 32, 32, 2
    $region77: #{tpu_custom_call.1} parent=1 // pred_fallthru
      _
    // Predicated region
    $region78: #{tpu_custom_call.1} parent=1 // pred_check
      _
    $region79: #{tpu_custom_call.1} parent=1 // pred_check_branch
      %534 = sbr.rel (0) target = $region81
    $region80: #{tpu_custom_call.1} parent=1 // pred_region
      %535 = dma.done [#allocation4], 128
    $region81: #{tpu_custom_call.1} parent=1 // pred_fallthru
      _
    %536 = vsyncpa [#allocation3], 1
    %537 = vsyncpa [#allocation6], 1
    %538 = vsyncpa [#allocation9], 1
    %539 = vsyncpa [#allocation12], 1
    %540 = vsyncpa [#allocation15], 1
    %541 = vsyncpa [#allocation4], 1

</llo_original>
